<compile_context>
chip_gen: v6e
topology: v6e:2x2x1
jax: 0.10.0
libtpu: 0.0.40
codegen_flags: <defaults>
</compile_context>

<pallas_src>
import jax
import jax.numpy as jnp
from jax import lax
from jax.experimental import pallas as pl
from jax.experimental.pallas import tpu as pltpu

_NEG_BIG = -1e30          # finite "minus infinity": exp(_NEG_BIG - x) underflows to 0
_VMEM_LIMIT = 48 * 1024 * 1024   # safe on v5e/v6e (128 MiB phys) and v7x (64 MiB phys)


def _is_v7x():
    try:
        kind = jax.devices()[0].device_kind.lower()
    except Exception:
        return False
    return ("v7" in kind) or ("tpu7" in kind)


# ----------------------------------------------------------------------------
# Training path (doc-tiled streaming online logsumexp, optionally split over 2 TCs):
#   scores = qry_cls @ doc_cls.T         (B, Nd),  Nd = B * group_size
#   labels = arange(B) * group_size
#   loss   = mean_b [ logsumexp(scores[b, :Nd]) - scores[b, b*group_size] ]
# ----------------------------------------------------------------------------
def _make_train_kernel(B, Nd, group_size, tile_n, tiles_per_split):
    def kernel(q_ref, d_ref, m_ref, l_ref, t_ref):
        c = pl.program_id(0)          # split index (parallel -> one per TensorCore)
        j = pl.program_id(1)          # doc-tile index within the split (arbitrary)

        @pl.when(j == 0)
        def _init():
            m_ref[...] = jnp.full((B, 1), _NEG_BIG, jnp.float32)
            l_ref[...] = jnp.zeros((B, 1), jnp.float32)
            t_ref[...] = jnp.zeros((B, 1), jnp.float32)

        # Native-dtype (e.g. bf16) operands straight to the MXU, f32 accumulation.
        # Contract dim 1 of both operands => q @ d_tile.T without an in-kernel transpose.
        s = lax.dot_general(q_ref[...], d_ref[...], (((1,), (1,)), ((), ())),
                            preferred_element_type=jnp.float32)      # (B, tile_n) f32

        # Logical (unclamped) global column index of every score in this tile.  The doc
        # index_map clamps the DMA so it always starts in-bounds; clamped-duplicate and
        # past-the-end columns are neutralised here with a finite large-negative value
        # (no -inf, so no inf-inf NaNs anywhere in the online update).
        tile_idx = c * tiles_per_split + j
        col = lax.broadcasted_iota(jnp.int32, (B, tile_n), 1) + tile_idx * tile_n
        s = jnp.where(col < Nd, s, _NEG_BIG)

        # Target logit of query b lives at global column b*group_size: one masked select
        # per tile (no materialized one-hot over the full Nd).  Reuses the same iotas.
        # TODO(synk): on v7x (post 2-TC split) this select could be pl.when-gated to the
        # tiles that actually contain a target column; with group_size <= tile_n that is
        # nearly every tile, so the gate is omitted.
        row = lax.broadcasted_iota(jnp.int32, (B, tile_n), 0)
        t_ref[...] += jnp.sum(jnp.where(col == row * group_size, s, 0.0),
                              axis=-1, keepdims=True)

        # Online logsumexp update (all f32, accumulated directly in the output blocks,
        # which stay VMEM-resident across the j axis).
        m_prev = m_ref[...]
        m_new = jnp.maximum(m_prev, jnp.max(s, axis=-1, keepdims=True))
        l_ref[...] = (jnp.exp(m_prev - m_new) * l_ref[...]
                      + jnp.sum(jnp.exp(s - m_new), axis=-1, keepdims=True))
        m_ref[...] = m_new

    return kernel


def retriever_train_loss(qry_cls, doc_cls, group_size, tile_n=None, n_splits=None):
    """Returns (loss, loss), matching the PyTorch training branch."""
    B, H = qry_cls.shape
    Nd = doc_cls.shape[0]
    # Label b -> column b*group_size assumes doc rows are grouped contiguously per query.
    assert Nd == B * group_size, "doc_cls rows must be contiguous groups of group_size"

    itemsize = doc_cls.dtype.itemsize
    v7x = _is_v7x()

    if tile_n is None:
        target = 2048 if v7x else 1024                 # multiple of 256
        budget = 24 * 1024 * 1024                      # double-buffered doc stream budget
        cap = max(256, ((budget // (2 * H * itemsize)) // 256) * 256)
        tile_n = min(target, cap)
    if tile_n >= Nd:
        tile_n = Nd           # single full-extent doc tile (full-dim blocks always legal)

    n_real_tiles = pl.cdiv(Nd, tile_n)
    if n_splits is None:
        n_splits = 2 if v7x else 1                     # v7x: 2 TCs share the doc stream
    n_splits = max(1, min(n_splits, n_real_tiles))     # never create an empty split
    tiles_per_split = pl.cdiv(n_real_tiles, n_splits)

    kernel = _make_train_kernel(B, Nd, group_size, tile_n, tiles_per_split)

    part_shape = jax.ShapeDtypeStruct((n_splits, B, 1), jnp.float32)
    part_spec = pl.BlockSpec((None, B, 1), lambda c, j: (c, 0, 0))

    # Clamp the DMA block index so the copy always starts in-bounds; the kernel masks any
    # clamped-duplicate columns via the logical (unclamped) column index.
    def doc_index(c, j):
        return (jnp.minimum(c * tiles_per_split + j, n_real_tiles - 1), 0)

    m_p, l_p, t_p = pl.pallas_call(
        kernel,
        out_shape=(part_shape, part_shape, part_shape),
        grid=(n_splits, tiles_per_split),
        in_specs=[
            pl.BlockSpec((B, H), lambda c, j: (0, 0)),   # queries stay resident
            # TODO(synk): if a profile shows exposed DMA at large tile_n, add
            # pipeline_mode=pl.Buffered(3) here (costs one extra doc tile of VMEM).
            pl.BlockSpec((tile_n, H), doc_index),        # doc tiles streamed (no pad copy)
        ],
        out_specs=(part_spec, part_spec, part_spec),
        compiler_params=pltpu.CompilerParams(
            dimension_semantics=("parallel", "arbitrary"),
            vmem_limit_bytes=_VMEM_LIMIT),
    )(qry_cls, doc_cls)

    # Combine the per-split partial logsumexps / target sums (tiny, plain-JAX glue).
    m_p, l_p, t_p = m_p[:, :, 0], l_p[:, :, 0], t_p[:, :, 0]   # (n_splits, B)
    m_tot = jnp.max(m_p, axis=0)                               # (B,)
    l_tot = jnp.sum(jnp.exp(m_p - m_tot[None, :]) * l_p, axis=0)
    lse = m_tot + jnp.log(l_tot)
    tgt = jnp.sum(t_p, axis=0)
    loss = jnp.mean(lse - tgt)
    return loss, loss


# ----------------------------------------------------------------------------
# Eval path:
#   doc_reps = doc_cls.view(-1, group_size, H)
#   score_ir[b, g] = sum_h qry_cls[b, h] * doc_reps[b, g, h]
# VPU multiply + lane reduction (M=1 batched MXU matmuls reload weights per row and
# saturate the MXU-push slot well above the HBM roofline; G << 128 anyway).
# ----------------------------------------------------------------------------
def _group_score_kernel(q_ref, d_ref, out_ref):
    q = q_ref[...].astype(jnp.float32)                  # (tb, H)
    d = d_ref[...].astype(jnp.float32)                  # (tb, G, H)
    # Output block is (tb, G): G < 128 lanes => masked vst, accepted (output bytes are
    # ~1% of input bytes on this HBM-bound kernel).
    out_ref[...] = jnp.sum(q[:, None, :] * d, axis=-1)


def retriever_eval_scores(qry_cls, doc_cls, group_size, tile_b=None):
    B, H = qry_cls.shape
    G = group_size
    assert doc_cls.shape[0] == B * G
    doc_reps = doc_cls.reshape(B, G, H)                 # glue reshape (no data movement)

    itemsize = doc_cls.dtype.itemsize
    if tile_b is None:
        # Doc block is tile_b*G*H*itemsize, double buffered, plus an f32 product temp:
        # keep the bf16 buffer around 6 MiB so the whole thing stays under 48 MiB VMEM.
        budget = 6 * 1024 * 1024
        tile_b = max(8, budget // max(1, G * H * itemsize))
    if tile_b >= B:
        tile_b = B                                       # full-dim block, always legal
    else:
        tile_b = max(8, (tile_b // 8) * 8)               # keep sublane-dim multiple of 8

    out = pl.pallas_call(
        _group_score_kernel,
        out_shape=jax.ShapeDtypeStruct((B, G), jnp.float32),
        grid=(pl.cdiv(B, tile_b),),                      # partial tail block, no pad copy
        in_specs=[
            pl.BlockSpec((tile_b, H), lambda i: (i, 0)),
            pl.BlockSpec((tile_b, G, H), lambda i: (i, 0, 0)),
        ],
        out_specs=pl.BlockSpec((tile_b, G), lambda i: (i, 0)),
        compiler_params=pltpu.CompilerParams(
            dimension_semantics=("parallel",),
            vmem_limit_bytes=_VMEM_LIMIT),
    )(qry_cls, doc_reps)
    return out


# ----------------------------------------------------------------------------
# Full forward (post-encoder): CLS extraction is glue, scoring/loss is in Pallas.
# ----------------------------------------------------------------------------
def retriever_forward(qry_last_hidden_state, doc_last_hidden_state, group_size, training):
    # TODO(synk): the HF transformer encoder (self.model) has no clean Pallas equivalent
    # here; its last_hidden_state is taken as the kernel input.
    qry_cls = qry_last_hidden_state[:, 0]   # (B, H)
    doc_cls = doc_last_hidden_state[:, 0]   # (B*G, H)
    if training:
        return retriever_train_loss(qry_cls, doc_cls, group_size)
    return retriever_eval_scores(qry_cls, doc_cls, group_size)


if __name__ == "__main__":
    key = jax.random.PRNGKey(0)
    k1, k2, k3, k4, k5, k6 = jax.random.split(key, 6)

    # ---- Test 1: module-sized shapes, default config (train + eval) -------------------
    B, GROUP, L, H = 2, 4, 8, 32   # batch=2 queries, train_group_size=4, seq=8, hidden=32
    qry_hidden = jax.random.normal(k1, (B, L, H), jnp.float32).astype(jnp.bfloat16)
    doc_hidden = jax.random.normal(k2, (B * GROUP, L, H), jnp.float32).astype(jnp.bfloat16)

    loss, loss2 = retriever_forward(qry_hidden, doc_hidden, GROUP, training=True)
    loss = jax.block_until_ready(loss)
    score_ir = jax.block_until_ready(
        retriever_forward(qry_hidden, doc_hidden, GROUP, training=False))

    q_cls = qry_hidden[:, 0].astype(jnp.float32)
    d_cls = doc_hidden[:, 0].astype(jnp.float32)
    ref_scores = q_cls @ d_cls.T
    ref_loss = jnp.mean(jax.nn.logsumexp(ref_scores, axis=-1)
                        - ref_scores[jnp.arange(B), jnp.arange(B) * GROUP])
    ref_ir = jnp.sum(q_cls[:, None, :] * d_cls.reshape(B, GROUP, H), axis=-1)
    assert score_ir.shape == (B, GROUP)
    assert jnp.allclose(loss, ref_loss, atol=2e-3, rtol=2e-3)
    assert jnp.allclose(loss, loss2)
    assert jnp.allclose(score_ir, ref_ir, atol=2e-3, rtol=2e-3)

    # ---- Test 2: streamed doc tiles, partial tail tile, forced 2-way split ------------
    B2, GROUP2, H2 = 3, 6, 64        # Nd = 18, tile_n = 8 -> 3 real tiles + clamped dup
    q2 = jax.random.normal(k3, (B2, H2), jnp.float32).astype(jnp.bfloat16)
    d2 = jax.random.normal(k4, (B2 * GROUP2, H2), jnp.float32).astype(jnp.bfloat16)
    loss_s, _ = retriever_train_loss(q2, d2, GROUP2, tile_n=8, n_splits=2)
    loss_s = jax.block_until_ready(loss_s)
    rs = q2.astype(jnp.float32) @ d2.astype(jnp.float32).T
    ref2 = jnp.mean(jax.nn.logsumexp(rs, axis=-1)
                    - rs[jnp.arange(B2), jnp.arange(B2) * GROUP2])
    assert jnp.allclose(loss_s, ref2, atol=2e-3, rtol=2e-3)

    # ---- Test 3: eval path with a partial batch tail block -----------------------------
    B3, GROUP3, H3 = 20, 4, 32
    q3 = jax.random.normal(k5, (B3, H3), jnp.float32).astype(jnp.bfloat16)
    d3 = jax.random.normal(k6, (B3 * GROUP3, H3), jnp.float32).astype(jnp.bfloat16)
    s3 = jax.block_until_ready(retriever_eval_scores(q3, d3, GROUP3, tile_b=8))
    ref3 = jnp.sum(q3.astype(jnp.float32)[:, None, :]
                   * d3.astype(jnp.float32).reshape(B3, GROUP3, H3), axis=-1)
    assert jnp.allclose(s3, ref3, atol=2e-3, rtol=2e-3)

    print("KERNEL_OK")
</pallas_src>

<mosaic_0001>
module attributes {stable_mosaic.version = 11 : i64} {
  func.func @kernel(%arg0: i32, %arg1: i32, %arg2: memref<2x32xbf16, #tpu.memory_space<vmem>>, %arg3: memref<8x32xbf16, #tpu.memory_space<vmem>>, %arg4: memref<1x2x1xf32, #tpu.memory_space<vmem>>, %arg5: memref<1x2x1xf32, #tpu.memory_space<vmem>>, %arg6: memref<1x2x1xf32, #tpu.memory_space<vmem>>) attributes {dimension_semantics = [#tpu.dimension_semantics<parallel>, #tpu.dimension_semantics<arbitrary>], iteration_bounds = array<i64: 1, 1>, scalar_prefetch = 0 : i64, scratch_operands = 0 : i64, tpu.core_type = #tpu.core_type<tc>, window_params = [{pipeline_mode = #tpu.pipeline_mode<synchronous>, transform_indices = @transform_0, window_bounds = array<i64: 2, 32>}, {transform_indices = @transform_1, window_bounds = array<i64: 8, 32>}, {transform_indices = @transform_2, window_bounds = array<i64: 1, 2, 1>}, {transform_indices = @transform_3, window_bounds = array<i64: 1, 2, 1>}, {transform_indices = @transform_4, window_bounds = array<i64: 1, 2, 1>}]} {
    %c0_i32 = arith.constant 0 : i32
    %0 = arith.cmpi eq, %arg1, %c0_i32 : i32
    %1 = arith.extui %0 : i1 to i32
    %c0_i32_0 = arith.constant 0 : i32
    %2 = arith.cmpi ne, %1, %c0_i32_0 : i32
    scf.if %2 {
      %cst_28 = arith.constant -1.000000e+30 : f32
      %52 = vector.broadcast %cst_28 : f32 to vector<2x1xf32>
      %c0_29 = arith.constant 0 : index
      %c0_30 = arith.constant 0 : index
      %c0_31 = arith.constant 0 : index
      %53 = vector.load %arg4[%c0_29, %c0_30, %c0_31] : memref<1x2x1xf32, #tpu.memory_space<vmem>>, vector<1x2x1xf32>
      %54 = vector.shape_cast %53 : vector<1x2x1xf32> to vector<2x1xf32>
      %55 = vector.shape_cast %52 : vector<2x1xf32> to vector<1x2x1xf32>
      tpu.vector_store %arg4[%c0_29, %c0_30, %c0_31], %55 {strides = array<i32>} : memref<1x2x1xf32, #tpu.memory_space<vmem>>, vector<1x2x1xf32>,
      %cst_32 = arith.constant 0.000000e+00 : f32
      %56 = vector.broadcast %cst_32 : f32 to vector<2x1xf32>
      %c0_33 = arith.constant 0 : index
      %c0_34 = arith.constant 0 : index
      %c0_35 = arith.constant 0 : index
      %57 = vector.load %arg5[%c0_33, %c0_34, %c0_35] : memref<1x2x1xf32, #tpu.memory_space<vmem>>, vector<1x2x1xf32>
      %58 = vector.shape_cast %57 : vector<1x2x1xf32> to vector<2x1xf32>
      %59 = vector.shape_cast %56 : vector<2x1xf32> to vector<1x2x1xf32>
      tpu.vector_store %arg5[%c0_33, %c0_34, %c0_35], %59 {strides = array<i32>} : memref<1x2x1xf32, #tpu.memory_space<vmem>>, vector<1x2x1xf32>,
      %cst_36 = arith.constant 0.000000e+00 : f32
      %60 = vector.broadcast %cst_36 : f32 to vector<2x1xf32>
      %c0_37 = arith.constant 0 : index
      %c0_38 = arith.constant 0 : index
      %c0_39 = arith.constant 0 : index
      %61 = vector.load %arg6[%c0_37, %c0_38, %c0_39] : memref<1x2x1xf32, #tpu.memory_space<vmem>>, vector<1x2x1xf32>
      %62 = vector.shape_cast %61 : vector<1x2x1xf32> to vector<2x1xf32>
      %63 = vector.shape_cast %60 : vector<2x1xf32> to vector<1x2x1xf32>
      tpu.vector_store %arg6[%c0_37, %c0_38, %c0_39], %63 {strides = array<i32>} : memref<1x2x1xf32, #tpu.memory_space<vmem>>, vector<1x2x1xf32>,
    } else {
    }
    %c0 = arith.constant 0 : index
    %c0_1 = arith.constant 0 : index
    %3 = vector.load %arg2[%c0, %c0_1] : memref<2x32xbf16, #tpu.memory_space<vmem>>, vector<2x32xbf16>
    %c0_2 = arith.constant 0 : index
    %c0_3 = arith.constant 0 : index
    %4 = vector.load %arg3[%c0_2, %c0_3] : memref<8x32xbf16, #tpu.memory_space<vmem>>, vector<8x32xbf16>
    %cst = arith.constant dense<0.000000e+00> : vector<2x8xf32>
    %5 = tpu.matmul %3, %4, %cst {dimension_numbers = #tpu.dot_dimension_numbers<[1], [1], [0], [0], [0, 0, 1, 0], [], []>} : vector<2x32xbf16>, vector<8x32xbf16>, vector<2x8xf32> -> vector<2x8xf32>
    %c1_i32 = arith.constant 1 : i32
    %6 = arith.muli %arg0, %c1_i32 : i32
    %7 = arith.addi %6, %arg1 : i32
    %8 = tpu.iota {dimensions = array<i32: 1>} : vector<2x8xi32>
    %c8_i32 = arith.constant 8 : i32
    %9 = arith.muli %7, %c8_i32 : i32
    %10 = vector.broadcast %9 : i32 to vector<2x8xi32>
    %11 = arith.addi %8, %10 : vector<2x8xi32>
    %c8_i32_4 = arith.constant 8 : i32
    %12 = vector.broadcast %c8_i32_4 : i32 to vector<2x8xi32>
    %13 = arith.cmpi slt, %11, %12 : vector<2x8xi32>
    %cst_5 = arith.constant -1.000000e+30 : f32
    %14 = vector.broadcast %cst_5 : f32 to vector<2x8xf32>
    %15 = arith.select %13, %5, %14 : vector<2x8xi1>, vector<2x8xf32>
    %16 = tpu.iota {dimensions = array<i32: 0>} : vector<2x8xi32>
    %c0_6 = arith.constant 0 : index
    %c0_7 = arith.constant 0 : index
    %c0_8 = arith.constant 0 : index
    %17 = vector.load %arg6[%c0_6, %c0_7, %c0_8] : memref<1x2x1xf32, #tpu.memory_space<vmem>>, vector<1x2x1xf32>
    %18 = vector.shape_cast %17 : vector<1x2x1xf32> to vector<2x1xf32>
    %c4_i32 = arith.constant 4 : i32
    %19 = vector.broadcast %c4_i32 : i32 to vector<2x8xi32>
    %20 = arith.muli %16, %19 : vector<2x8xi32>
    %21 = arith.cmpi eq, %11, %20 : vector<2x8xi32>
    %cst_9 = arith.constant 0.000000e+00 : f32
    %22 = vector.broadcast %cst_9 : f32 to vector<2x8xf32>
    %23 = arith.select %21, %15, %22 : vector<2x8xi1>, vector<2x8xf32>
    %cst_10 = arith.constant dense<0.000000e+00> : vector<2xf32>
    %24 = vector.multi_reduction <add>, %23, %cst_10 [1] : vector<2x8xf32> to vector<2xf32>
    %25 = vector.shape_cast %24 : vector<2xf32> to vector<2x1xf32>
    %26 = arith.addf %18, %25 : vector<2x1xf32>
    %c0_11 = arith.constant 0 : index
    %c0_12 = arith.constant 0 : index
    %c0_13 = arith.constant 0 : index
    %27 = vector.load %arg6[%c0_11, %c0_12, %c0_13] : memref<1x2x1xf32, #tpu.memory_space<vmem>>, vector<1x2x1xf32>
    %28 = vector.shape_cast %27 : vector<1x2x1xf32> to vector<2x1xf32>
    %29 = vector.shape_cast %26 : vector<2x1xf32> to vector<1x2x1xf32>
    tpu.vector_store %arg6[%c0_11, %c0_12, %c0_13], %29 {strides = array<i32>} : memref<1x2x1xf32, #tpu.memory_space<vmem>>, vector<1x2x1xf32>,
    %c0_14 = arith.constant 0 : index
    %c0_15 = arith.constant 0 : index
    %c0_16 = arith.constant 0 : index
    %30 = vector.load %arg4[%c0_14, %c0_15, %c0_16] : memref<1x2x1xf32, #tpu.memory_space<vmem>>, vector<1x2x1xf32>
    %31 = vector.shape_cast %30 : vector<1x2x1xf32> to vector<2x1xf32>
    %cst_17 = arith.constant dense<0xFF800000> : vector<2xf32>
    %32 = vector.multi_reduction <maximumf>, %15, %cst_17 [1] : vector<2x8xf32> to vector<2xf32>
    %33 = vector.shape_cast %32 : vector<2xf32> to vector<2x1xf32>
    %34 = arith.maximumf %31, %33 : vector<2x1xf32>
    %35 = arith.subf %31, %34 : vector<2x1xf32>
    %36 = math.exp %35 : vector<2x1xf32>
    %c0_18 = arith.constant 0 : index
    %c0_19 = arith.constant 0 : index
    %c0_20 = arith.constant 0 : index
    %37 = vector.load %arg5[%c0_18, %c0_19, %c0_20] : memref<1x2x1xf32, #tpu.memory_space<vmem>>, vector<1x2x1xf32>
    %38 = vector.shape_cast %37 : vector<1x2x1xf32> to vector<2x1xf32>
    %39 = arith.mulf %36, %38 : vector<2x1xf32>
    %40 = vector.broadcast %34 : vector<2x1xf32> to vector<2x8xf32>
    %41 = arith.subf %15, %40 : vector<2x8xf32>
    %42 = math.exp %41 : vector<2x8xf32>
    %cst_21 = arith.constant dense<0.000000e+00> : vector<2xf32>
    %43 = vector.multi_reduction <add>, %42, %cst_21 [1] : vector<2x8xf32> to vector<2xf32>
    %44 = vector.shape_cast %43 : vector<2xf32> to vector<2x1xf32>
    %45 = arith.addf %39, %44 : vector<2x1xf32>
    %c0_22 = arith.constant 0 : index
    %c0_23 = arith.constant 0 : index
    %c0_24 = arith.constant 0 : index
    %46 = vector.load %arg5[%c0_22, %c0_23, %c0_24] : memref<1x2x1xf32, #tpu.memory_space<vmem>>, vector<1x2x1xf32>
    %47 = vector.shape_cast %46 : vector<1x2x1xf32> to vector<2x1xf32>
    %48 = vector.shape_cast %45 : vector<2x1xf32> to vector<1x2x1xf32>
    tpu.vector_store %arg5[%c0_22, %c0_23, %c0_24], %48 {strides = array<i32>} : memref<1x2x1xf32, #tpu.memory_space<vmem>>, vector<1x2x1xf32>,
    %c0_25 = arith.constant 0 : index
    %c0_26 = arith.constant 0 : index
    %c0_27 = arith.constant 0 : index
    %49 = vector.load %arg4[%c0_25, %c0_26, %c0_27] : memref<1x2x1xf32, #tpu.memory_space<vmem>>, vector<1x2x1xf32>
    %50 = vector.shape_cast %49 : vector<1x2x1xf32> to vector<2x1xf32>
    %51 = vector.shape_cast %34 : vector<2x1xf32> to vector<1x2x1xf32>
    tpu.vector_store %arg4[%c0_25, %c0_26, %c0_27], %51 {strides = array<i32>} : memref<1x2x1xf32, #tpu.memory_space<vmem>>, vector<1x2x1xf32>,
    return
  }
  func.func @transform_0(%arg0: i32, %arg1: i32) -> (i32, i32) {
    %c0_i32 = arith.constant 0 : i32
    %c0_i32_0 = arith.constant 0 : i32
    %c0_i32_1 = arith.constant 0 : i32
    return %c0_i32, %c0_i32_0 : i32, i32
  }
  func.func @transform_1(%arg0: i32, %arg1: i32) -> (i32, i32) {
    %c1_i32 = arith.constant 1 : i32
    %0 = arith.muli %arg0, %c1_i32 : i32
    %1 = arith.addi %0, %arg1 : i32
    %c0_i32 = arith.constant 0 : i32
    %2 = arith.minsi %1, %c0_i32 : i32
    %c0_i32_0 = arith.constant 0 : i32
    %c0_i32_1 = arith.constant 0 : i32
    return %2, %c0_i32_0 : i32, i32
  }
  func.func @transform_2(%arg0: i32, %arg1: i32) -> (i32, i32, i32) {
    %c0_i32 = arith.constant 0 : i32
    %c0_i32_0 = arith.constant 0 : i32
    %c0_i32_1 = arith.constant 0 : i32
    return %arg0, %c0_i32, %c0_i32_0 : i32, i32, i32
  }
  func.func @transform_3(%arg0: i32, %arg1: i32) -> (i32, i32, i32) {
    %c0_i32 = arith.constant 0 : i32
    %c0_i32_0 = arith.constant 0 : i32
    %c0_i32_1 = arith.constant 0 : i32
    return %arg0, %c0_i32, %c0_i32_0 : i32, i32, i32
  }
  func.func @transform_4(%arg0: i32, %arg1: i32) -> (i32, i32, i32) {
    %c0_i32 = arith.constant 0 : i32
    %c0_i32_0 = arith.constant 0 : i32
    %c0_i32_1 = arith.constant 0 : i32
    return %arg0, %c0_i32, %c0_i32_0 : i32, i32, i32
  }
}

</mosaic_0001>

<llo_original>
// kernel: tpu_custom_call.1
$region0: #{tpu_custom_call.1}
  #allocation0 [shape = 'u32[]', space=smem, size = 0x4, offset = 0x4, fixed_abs, tag = 'smem constant byte address 0x4 - core index']
  #allocation1 [shape = 'u32[144,128]{1,0:T(1,128)}', space=vmem, size = 0x12000, scoped, tag = 'internal scratch']
  %s0 = inlined_call_operand.hbm [shape: bf16[2,32], index: 0, kind: input, shape index: {}]
  %s1 = inlined_call_operand.hbm [shape: bf16[8,32], index: 1, kind: input, shape index: {}]
  %s2 = inlined_call_operand.vmem [shape: f32[1,2,1], index: 2, kind: output, shape index: {0}]
  %s3 = inlined_call_operand.vmem [shape: f32[1,2,1], index: 3, kind: output, shape index: {1}]
  %s4 = inlined_call_operand.vmem [shape: f32[1,2,1], index: 4, kind: output, shape index: {2}]
  %5 = xla_tuple %s2, %s3, %s4
  %s6 = sld [smem:[#allocation0]]
  $region46: #{tpu_custom_call.1} parent=0
    _
  %s8 = ssub.s32 1, %s6
  %s9 = scalar_select 0, %s8, %s6
  $region1: #{tpu_custom_call.1} parent=0
    #allocation2 [shape = 'u8[512]{0}', space=vmem, size = 0x400, scoped, tag = 'input window, operand 0, single buffered']
    #allocation3 [shape = 's32[1]{0}', space=sflag, size = 0x4, scoped, tag = 'scoped memory for tpu_custom_call.1']
    #allocation4 [shape = 'u8[2048]{0}', space=vmem, size = 0x800, scoped, tag = 'input window, operand 1, single buffered']
    #allocation5 [shape = 's32[1]{0}', space=sflag, size = 0x4, scoped, tag = 'scoped memory for tpu_custom_call.1']
    %10 = vsyncpa [#allocation3], 0
    %11 = vsyncpa [#allocation5], 0
    // Predicated region
    $region2: #{tpu_custom_call.1} parent=1 // pred_check
      _
    $region3: #{tpu_custom_call.1} parent=1 // pred_check_branch
      %13 = sbr.rel (0) target = $region5
    $region4: #{tpu_custom_call.1} parent=1 // pred_region
      %s15 = ssub.s32 16, 16
      %16 = vsyncadd [#allocation3], %s15
      %s18 = sshll.u32 [#allocation2], 4
      %s19 = int_to_ptr.vmem [resolvable:$true] %s18
      %21 = dma.hbm_to_vmem [thread:$0]  %s0, 16, %s19, [#allocation3]
    $region5: #{tpu_custom_call.1} parent=1 // pred_fallthru
      _
    // Predicated region
    $region6: #{tpu_custom_call.1} parent=1 // pred_check
      _
    $region7: #{tpu_custom_call.1} parent=1 // pred_check_branch
      %23 = sbr.rel (0) target = $region9
    $region8: #{tpu_custom_call.1} parent=1 // pred_region
      %s24 = sadd.s32 0, 0
      %p25 = scmp.lt.s32.totalorder %s24, 0
      %s26 = scalar_select %p25, %s24, 0
      %s28 = ssub.s32 64, 64
      %29 = vsyncadd [#allocation5], %s28
      %s30 = smul.addr %s26, 64
      %s31 = scalar_lea.hbm %s1, %s30
      %s33 = sshll.u32 [#allocation4], 4
      %s34 = int_to_ptr.vmem [resolvable:$true] %s33
      %36 = dma.hbm_to_vmem [thread:$0]  %s31, 64, %s34, [#allocation5]
    $region9: #{tpu_custom_call.1} parent=1 // pred_fallthru
      _
    // Predicated region
    $region10: #{tpu_custom_call.1} parent=1 // pred_check
      _
    $region11: #{tpu_custom_call.1} parent=1 // pred_check_branch
      %38 = sbr.rel (0) target = $region13
    $region12: #{tpu_custom_call.1} parent=1 // pred_region
      %39 = dma.done [#allocation3], 16
    $region13: #{tpu_custom_call.1} parent=1 // pred_fallthru
      _
    // Predicated region
    $region14: #{tpu_custom_call.1} parent=1 // pred_check
      _
    $region15: #{tpu_custom_call.1} parent=1 // pred_check_branch
      %41 = sbr.rel (0) target = $region17
    $region16: #{tpu_custom_call.1} parent=1 // pred_region
      %42 = dma.done [#allocation5], 64
    $region17: #{tpu_custom_call.1} parent=1 // pred_fallthru
      _
    %s43 = sadd.s32 0, 0
    %p44 = scmp.lt.s32.totalorder %s43, 0
    %s45 = scalar_select %p44, %s43, 0
    %p47 = scmp.eq.s32.totalorder 0, 0
    // Predicated region
    $region18: #{tpu_custom_call.1} parent=1 // pred_check
      %p48 = pneg %p47
    $region19: #{tpu_custom_call.1} parent=1 // pred_check_branch
      %50 = sbr.rel (%p48) target = $region21
    $region20: #{tpu_custom_call.1} parent=1 // pred_region
      %vm51 = vcmask 1024
      %52 = vst.msk [vmem:[%s2] sm:$0x3] %vm51, -1e+30
      %53 = vst.msk [vmem:[%s3] sm:$0x3] %vm51, 0.0
      %54 = vst.msk [vmem:[%s4] sm:$0x3] %vm51, 0.0
    $region21: #{tpu_custom_call.1} parent=1 // pred_fallthru
      _
    %v55 = vld [vmem:[#allocation2] sm:$0x1]
    %v56 = vld [vmem:[#allocation4] sm:$0xf]
    %vm57 = vcmask 261120
    %v59 = vsel %vm57, %v55, 0
    %v62 = vsel %vm57, %v56, 0
    %64 = vmatprep.subr.bf16.mxu0 0
    %65 = vmatpush1.bf16.xpose.msra.mxu0 0
    %66 = vmatprep.subr.bf16.mxu0 0
    %67 = vmatpush1.bf16.xpose.msra.mxu0 0
    %68 = vmatprep.subr.bf16.mxu0 0
    %69 = vmatpush1.bf16.xpose.msra.mxu0 0
    %70 = vmatprep.subr.bf16.mxu0 0
    %71 = vmatpush1.bf16.xpose.msra.mxu0 0
    %72 = vmatprep.subr.bf16.mxu0 0
    %73 = vmatpush1.bf16.xpose.msra.mxu0 0
    %74 = vmatprep.subr.bf16.mxu0 0
    %75 = vmatpush1.bf16.xpose.msra.mxu0 0
    %76 = vmatprep.subr.bf16.mxu0 0
    %77 = vmatpush1.bf16.xpose.msra.mxu0 0
    %78 = vmatprep.subr.bf16.mxu0 0
    %79 = vmatpush1.bf16.xpose.msra.mxu0 %v62
    %80 = vmatprep.subr.bf16.mxu0 0
    %81 = vmatpush2.bf16.xpose.msra.mxu0 0
    %82 = vmatprep.subr.bf16.mxu0 0
    %83 = vmatpush2.bf16.xpose.msra.mxu0 0
    %84 = vmatprep.subr.bf16.mxu0 0
    %85 = vmatpush2.bf16.xpose.msra.mxu0 0
    %86 = vmatprep.subr.bf16.mxu0 0
    %87 = vmatpush2.bf16.xpose.msra.mxu0 0
    %88 = vmatprep.subr.bf16.mxu0 0
    %89 = vmatpush2.bf16.xpose.msra.mxu0 0
    %90 = vmatprep.subr.bf16.mxu0 0
    %91 = vmatpush2.bf16.xpose.msra.mxu0 0
    %92 = vmatprep.subr.bf16.mxu0 0
    %93 = vmatpush2.bf16.xpose.msra.mxu0 0
    %94 = vmatprep.subr.bf16.mxu0 0
    %95 = vmatpush2.bf16.xpose.msra.mxu0 0
    %96 = vmatprep.mubr.bf16.mxu0 0
    %97 = vmatmul.mubr.bf16.gmra.mxu0 %v59
    %v98 = vpop.f32.mrf.mxu0
    %v99 = vadd.f32 0.0, %v98
    %v100 = vpop.f32.mrf.mxu0
    %v101 = vpop.f32.mrf.mxu0
    %v102 = vpop.f32.mrf.mxu0
    %103 = vdwg.mxu0
    %s104 = sadd.s32 0, 0
    %v105 = vlaneseq
    %v106 = vand.u32 %v105, 127
    %s107 = smul.u32 %s104, 8
    %v108 = vstv %s107
    %v109 = vadd.s32 %v106, %v108
    %vm110 = vcmp.lt.s32.totalorder %v109, 8
    %v111 = vsel %vm110, %v99, -1e+30
    %v112 = vlaneseq
    %v113 = vshrl.u32 %v112, 7
    %v114 = vld [vmem:[%s4] sm:$0x3]
    %v115 = vmul.u32 %v113, 4
    %vm116 = vcmp.eq.s32.totalorder %v109, %v115
    %v117 = vsel %vm116, %v111, 0.0
    %vm118 = vcmask 58368
    %v119 = vsel %vm118, %v117, 0.0
    %120 = vadd.xlane.f32.xlu0 %v119
    %v121 = vpop.xlane.xlu0 %120
    %v122 = vadd.f32 %v114, %v121
    %vm123 = vcmask 1024
    %124 = vst.msk [vmem:[%s4] sm:$0x3] %vm123, %v122
    %v125 = vld [vmem:[%s2] sm:$0x3]
    %v126 = vsel %vm118, %v111, -inf
    %127 = vmax.xlane.f32.xlu0 %v126
    %v128 = vpop.xlane.xlu0 %127
    %v129 = vmax.f32 %v125, %v128
    %v130 = vsub.f32 %v125, %v129
    %v131 = vmul.f32 %v130, 1.442695
    %v132 = vpow.pop %v131
    %v133 = vld [vmem:[%s3] sm:$0x3]
    %v134 = vmul.f32 %v132, %v133
    %136 = vset.pattern.permute.xlu0 0
    %137 = vperm.xlu0 %136, %v129
    %v138 = vpop.permute.xlu0 %137
    %v140 = vsub.f32 %v111, %v138
    %v141 = vmul.f32 %v140, 1.442695
    %v142 = vpow.pop %v141
    %v143 = vsel %vm118, %v142, 0.0
    %144 = vadd.xlane.f32.xlu0 %v143
    %v145 = vpop.xlane.xlu0 %144
    %v146 = vadd.f32 %v134, %v145
    %147 = vst.msk [vmem:[%s3] sm:$0x3] %vm123, %v146
    %148 = vst.msk [vmem:[%s2] sm:$0x3] %vm123, %v129
    // Predicated region
    $region22: #{tpu_custom_call.1} parent=1 // pred_check
      _
    $region23: #{tpu_custom_call.1} parent=1 // pred_check_branch
      %150 = sbr.rel (0) target = $region25
    $region24: #{tpu_custom_call.1} parent=1 // pred_region
      _
    $region25: #{tpu_custom_call.1} parent=1 // pred_fallthru
      _
    // Predicated region
    $region26: #{tpu_custom_call.1} parent=1 // pred_check
      _
    $region27: #{tpu_custom_call.1} parent=1 // pred_check_branch
      %152 = sbr.rel (0) target = $region29
    $region28: #{tpu_custom_call.1} parent=1 // pred_region
      _
    $region29: #{tpu_custom_call.1} parent=1 // pred_fallthru
      _
    // Predicated region
    $region30: #{tpu_custom_call.1} parent=1 // pred_check
      _
    $region31: #{tpu_custom_call.1} parent=1 // pred_check_branch
      %154 = sbr.rel (0) target = $region33
    $region32: #{tpu_custom_call.1} parent=1 // pred_region
      _
    $region33: #{tpu_custom_call.1} parent=1 // pred_fallthru
      _
    // Predicated region
    $region34: #{tpu_custom_call.1} parent=1 // pred_check
      _
    $region35: #{tpu_custom_call.1} parent=1 // pred_check_branch
      %156 = sbr.rel (0) target = $region37
    $region36: #{tpu_custom_call.1} parent=1 // pred_region
      _
    $region37: #{tpu_custom_call.1} parent=1 // pred_fallthru
      _
    // Predicated region
    $region38: #{tpu_custom_call.1} parent=1 // pred_check
      _
    $region39: #{tpu_custom_call.1} parent=1 // pred_check_branch
      %158 = sbr.rel (0) target = $region41
    $region40: #{tpu_custom_call.1} parent=1 // pred_region
      _
    $region41: #{tpu_custom_call.1} parent=1 // pred_fallthru
      _
    // Predicated region
    $region42: #{tpu_custom_call.1} parent=1 // pred_check
      _
    $region43: #{tpu_custom_call.1} parent=1 // pred_check_branch
      %160 = sbr.rel (0) target = $region45
    $region44: #{tpu_custom_call.1} parent=1 // pred_region
      _
    $region45: #{tpu_custom_call.1} parent=1 // pred_fallthru
      _
    %161 = vsyncpa [#allocation3], 1
    %162 = vsyncpa [#allocation5], 1

</llo_original>
